<compile_context>
chip_gen: v7x
topology: tpu7x:2x2x1
jax: 0.10.0
libtpu: 0.0.40
codegen_flags: <defaults>
</compile_context>

<pallas_src>
import jax
import jax.numpy as jnp
from jax.experimental import pallas as pl
from jax.experimental.pallas import tpu as pltpu


def _exp_ratio_kernel(times_ref, t0_ref, fm_ref, scal_ref, y_ref):
    # times_ref: (Bb, 1, T)    t0_ref, fm_ref: (Bb, NB, 1)
    # scal_ref:  (Bb, 1, 4)    columns = [f0, lambda_rise, lambda_fall, pad]
    # y_ref:     (Bb, NB, T)   lane-dense: time on the 128-wide lane axis
    t = times_ref[...]                               # (Bb, 1, T)
    t0 = t0_ref[...]                                 # (Bb, NB, 1)
    fm = fm_ref[...]                                 # (Bb, NB, 1)
    scal = scal_ref[...]                             # (Bb, 1, 4)

    f0 = scal[:, :, 0:1]                             # (Bb, 1, 1)
    lam_r = jnp.maximum(scal[:, :, 1:2], 0.0)        # clamp(min=0)
    lam_f = jnp.maximum(scal[:, :, 2:3], 0.0)        # clamp(min=0)

    dt = t - t0                                      # (Bb, NB, T)
    t_f = -dt * lam_f
    t_r = -dt * lam_r

    # exp(t_f - log1p(exp(t_r))) via stable softplus:
    #   softplus(x) = max(x, 0) + log1p(exp(-|x|))
    #   => z = exp(t_f - max(t_r, 0)) / (1 + exp(-|t_r|))
    tr_pos = jnp.maximum(t_r, 0.0)
    denom = 1.0 + jnp.exp(-jnp.abs(t_r))             # in (1, 2]; never overflows
    z = jnp.exp(t_f - tr_pos) / denom

    y_ref[...] = (fm * z + f0).astype(y_ref.dtype)


def _pick_block_batch(B, NB, T, max_block_bytes=2 << 20):
    """Largest divisor of B such that the output block stays <= max_block_bytes
    and (when B >= 2) the grid keeps at least 2 steps (v7x has 2 TCs/chip)."""
    per_batch_bytes = 4 * NB * T
    best = 1
    for cand in range(1, B + 1):
        if B % cand != 0:
            continue
        if cand * per_batch_bytes > max_block_bytes:
            continue
        if B >= 2 and (B // cand) < 2:
            continue
        best = cand
    return best


def exp_ratio_curve_forward(times, t0, fm, f0, lambda_rise, lambda_fall,
                            *, transpose_output=True):
    """Pallas forward for ExpRatioCurve.

    times: (B, T) f32; t0, fm: (B, NB) f32; f0, lambda_rise, lambda_fall: (B,) f32
    Returns y: (B, T, NB) f32 (PyTorch layout) when transpose_output=True,
    otherwise the kernel-native lane-dense layout (B, NB, T).
    """
    B, T = times.shape
    _, NB = t0.shape

    b_blk = _pick_block_batch(B, NB, T)
    grid = (B // b_blk,)

    # Reshape inputs so each operand is DMA'd in the orientation it is
    # broadcast in: time already on lanes, bands on sublanes, scalars packed.
    times_3d = times.reshape(B, 1, T).astype(jnp.float32)
    t0_3d = t0.reshape(B, NB, 1).astype(jnp.float32)
    fm_3d = fm.reshape(B, NB, 1).astype(jnp.float32)
    scal = jnp.stack(
        [f0, lambda_rise, lambda_fall, jnp.zeros_like(f0)], axis=-1
    ).astype(jnp.float32).reshape(B, 1, 4)

    y_nbt = pl.pallas_call(
        _exp_ratio_kernel,
        out_shape=jax.ShapeDtypeStruct((B, NB, T), jnp.float32),
        grid_spec=pltpu.PrefetchScalarGridSpec(
            num_scalar_prefetch=0,
            grid=grid,
            in_specs=[
                pl.BlockSpec((b_blk, 1, T), lambda b: (b, 0, 0)),    # times
                pl.BlockSpec((b_blk, NB, 1), lambda b: (b, 0, 0)),   # t0
                pl.BlockSpec((b_blk, NB, 1), lambda b: (b, 0, 0)),   # fm
                pl.BlockSpec((b_blk, 1, 4), lambda b: (b, 0, 0)),    # packed scalars
            ],
            out_specs=pl.BlockSpec((b_blk, NB, T), lambda b: (b, 0, 0)),
        ),
        compiler_params=pltpu.CompilerParams(
            dimension_semantics=("parallel",),
            # Explicit budget with headroom; blocks are capped at ~2 MiB so
            # double-buffering fits v7x's smaller VMEM as well as v5e/v6e.
            vmem_limit_bytes=32 * 1024 * 1024,
        ),
    )(times_3d, t0_3d, fm_3d, scal)

    if transpose_output:
        # Match PyTorch's (B, T, NB) layout; done outside the kernel so the
        # kernel's stores stay lane-dense.
        return jnp.transpose(y_nbt, (0, 2, 1))
    return y_nbt


def exp_ratio_curve_reference(times, t0, fm, f0, lambda_rise, lambda_fall):
    """Pure-JAX reference mirroring the PyTorch forward exactly."""
    dt = times[:, :, None] - t0[:, None, :]
    lam_f = jnp.maximum(lambda_fall, 0.0)[:, None, None]
    lam_r = jnp.maximum(lambda_rise, 0.0)[:, None, None]
    t_f = -dt * lam_f
    t_r = -dt * lam_r
    z = jnp.exp(t_f - jnp.log1p(jnp.exp(t_r)))
    return fm[:, None, :] * z + f0[:, None, None]


if __name__ == "__main__":
    # Small shapes consistent with the module: batch=4 light curves,
    # n_bands=8 photometric bands, T=16 time samples per curve.
    B, NB, T = 4, 8, 16

    key = jax.random.PRNGKey(0)
    k_t, k_t0, k_fm, k_f0, k_lr, k_lf = jax.random.split(key, 6)

    times = jax.random.uniform(k_t, (B, T), dtype=jnp.float32)
    t0 = jax.random.uniform(k_t0, (B, NB), dtype=jnp.float32)
    fm = jax.random.uniform(k_fm, (B, NB), dtype=jnp.float32) + 0.5
    f0 = 0.1 * jax.random.normal(k_f0, (B,), dtype=jnp.float32)
    # Include a negative value to exercise the clamp(min=0) path.
    lambda_rise = jax.random.uniform(k_lr, (B,), dtype=jnp.float32,
                                     minval=-0.5, maxval=2.0)
    lambda_fall = jax.random.uniform(k_lf, (B,), dtype=jnp.float32,
                                     minval=0.5, maxval=2.0)

    # TODO(synk): the optional `masks` boolean-indexing path (y[masks]) has a
    # data-dependent output shape and no clean Pallas equivalent; omitted.

    y = exp_ratio_curve_forward(times, t0, fm, f0, lambda_rise, lambda_fall)
    y = jax.block_until_ready(y)

    y_ref = exp_ratio_curve_reference(times, t0, fm, f0, lambda_rise, lambda_fall)
    assert y.shape == (B, T, NB) and y.dtype == jnp.float32
    assert jnp.allclose(y, y_ref, rtol=1e-5, atol=1e-5)

    print("KERNEL_OK")
</pallas_src>

<mosaic_0001>
module attributes {stable_mosaic.version = 11 : i64} {
  func.func @_exp_ratio_kernel(%arg0: i32, %arg1: memref<2x1x16xf32, #tpu.memory_space<vmem>>, %arg2: memref<2x8x1xf32, #tpu.memory_space<vmem>>, %arg3: memref<2x8x1xf32, #tpu.memory_space<vmem>>, %arg4: memref<2x1x4xf32, #tpu.memory_space<vmem>>, %arg5: memref<2x8x16xf32, #tpu.memory_space<vmem>>) attributes {dimension_semantics = [#tpu.dimension_semantics<parallel>], iteration_bounds = array<i64: 2>, scalar_prefetch = 0 : i64, scratch_operands = 0 : i64, tpu.core_type = #tpu.core_type<tc>, window_params = [{transform_indices = @transform_0, window_bounds = array<i64: 2, 1, 16>}, {transform_indices = @transform_1, window_bounds = array<i64: 2, 8, 1>}, {transform_indices = @transform_2, window_bounds = array<i64: 2, 8, 1>}, {transform_indices = @transform_3, window_bounds = array<i64: 2, 1, 4>}, {transform_indices = @transform_4, window_bounds = array<i64: 2, 8, 16>}]} {
    %c0 = arith.constant 0 : index
    %c0_0 = arith.constant 0 : index
    %c0_1 = arith.constant 0 : index
    %0 = vector.load %arg1[%c0, %c0_0, %c0_1] : memref<2x1x16xf32, #tpu.memory_space<vmem>>, vector<2x1x16xf32>
    %c0_2 = arith.constant 0 : index
    %c0_3 = arith.constant 0 : index
    %c0_4 = arith.constant 0 : index
    %1 = vector.load %arg2[%c0_2, %c0_3, %c0_4] : memref<2x8x1xf32, #tpu.memory_space<vmem>>, vector<2x8x1xf32>
    %c0_5 = arith.constant 0 : index
    %c0_6 = arith.constant 0 : index
    %c0_7 = arith.constant 0 : index
    %2 = vector.load %arg3[%c0_5, %c0_6, %c0_7] : memref<2x8x1xf32, #tpu.memory_space<vmem>>, vector<2x8x1xf32>
    %c0_8 = arith.constant 0 : index
    %c0_9 = arith.constant 0 : index
    %c0_10 = arith.constant 0 : index
    %3 = vector.load %arg4[%c0_8, %c0_9, %c0_10] : memref<2x1x4xf32, #tpu.memory_space<vmem>>, vector<2x1x4xf32>
    %4 = vector.extract_strided_slice %3 {offsets = [0, 0, 0], sizes = [2, 1, 1], strides = [1, 1, 1]} : vector<2x1x4xf32> to vector<2x1x1xf32>
    %5 = vector.extract_strided_slice %3 {offsets = [0, 0, 1], sizes = [2, 1, 1], strides = [1, 1, 1]} : vector<2x1x4xf32> to vector<2x1x1xf32>
    %cst = arith.constant 0.000000e+00 : f32
    %6 = vector.broadcast %cst : f32 to vector<2x1x1xf32>
    %7 = arith.maximumf %5, %6 : vector<2x1x1xf32>
    %8 = vector.extract_strided_slice %3 {offsets = [0, 0, 2], sizes = [2, 1, 1], strides = [1, 1, 1]} : vector<2x1x4xf32> to vector<2x1x1xf32>
    %cst_11 = arith.constant 0.000000e+00 : f32
    %9 = vector.broadcast %cst_11 : f32 to vector<2x1x1xf32>
    %10 = arith.maximumf %8, %9 : vector<2x1x1xf32>
    %11 = vector.broadcast %0 : vector<2x1x16xf32> to vector<2x8x16xf32>
    %12 = vector.broadcast %1 : vector<2x8x1xf32> to vector<2x8x16xf32>
    %13 = arith.subf %11, %12 : vector<2x8x16xf32>
    %cst_12 = arith.constant 0.000000e+00 : f32
    %14 = vector.broadcast %cst_12 : f32 to vector<2x8x16xf32>
    %15 = arith.subf %14, %13 : vector<2x8x16xf32>
    %16 = vector.broadcast %10 : vector<2x1x1xf32> to vector<2x8x16xf32>
    %17 = arith.mulf %15, %16 : vector<2x8x16xf32>
    %cst_13 = arith.constant 0.000000e+00 : f32
    %18 = vector.broadcast %cst_13 : f32 to vector<2x8x16xf32>
    %19 = arith.subf %18, %13 : vector<2x8x16xf32>
    %20 = vector.broadcast %7 : vector<2x1x1xf32> to vector<2x8x16xf32>
    %21 = arith.mulf %19, %20 : vector<2x8x16xf32>
    %cst_14 = arith.constant 0.000000e+00 : f32
    %22 = vector.broadcast %cst_14 : f32 to vector<2x8x16xf32>
    %23 = arith.maximumf %21, %22 : vector<2x8x16xf32>
    %24 = math.absf %21 : vector<2x8x16xf32>
    %cst_15 = arith.constant 0.000000e+00 : f32
    %25 = vector.broadcast %cst_15 : f32 to vector<2x8x16xf32>
    %26 = arith.subf %25, %24 : vector<2x8x16xf32>
    %27 = math.exp %26 : vector<2x8x16xf32>
    %cst_16 = arith.constant 1.000000e+00 : f32
    %28 = vector.broadcast %cst_16 : f32 to vector<2x8x16xf32>
    %29 = arith.addf %28, %27 : vector<2x8x16xf32>
    %30 = arith.subf %17, %23 : vector<2x8x16xf32>
    %31 = math.exp %30 : vector<2x8x16xf32>
    %32 = arith.divf %31, %29 : vector<2x8x16xf32>
    %33 = vector.broadcast %2 : vector<2x8x1xf32> to vector<2x8x16xf32>
    %34 = arith.mulf %33, %32 : vector<2x8x16xf32>
    %35 = vector.broadcast %4 : vector<2x1x1xf32> to vector<2x8x16xf32>
    %36 = arith.addf %34, %35 : vector<2x8x16xf32>
    %c0_17 = arith.constant 0 : index
    %c0_18 = arith.constant 0 : index
    %c0_19 = arith.constant 0 : index
    %37 = vector.load %arg5[%c0_17, %c0_18, %c0_19] : memref<2x8x16xf32, #tpu.memory_space<vmem>>, vector<2x8x16xf32>
    tpu.vector_store %arg5[%c0_17, %c0_18, %c0_19], %36 {strides = array<i32>} : memref<2x8x16xf32, #tpu.memory_space<vmem>>, vector<2x8x16xf32>,
    return
  }
  func.func @transform_0(%arg0: i32) -> (i32, i32, i32) {
    %c0_i32 = arith.constant 0 : i32
    %c0_i32_0 = arith.constant 0 : i32
    %c0_i32_1 = arith.constant 0 : i32
    return %arg0, %c0_i32, %c0_i32_0 : i32, i32, i32
  }
  func.func @transform_1(%arg0: i32) -> (i32, i32, i32) {
    %c0_i32 = arith.constant 0 : i32
    %c0_i32_0 = arith.constant 0 : i32
    %c0_i32_1 = arith.constant 0 : i32
    return %arg0, %c0_i32, %c0_i32_0 : i32, i32, i32
  }
  func.func @transform_2(%arg0: i32) -> (i32, i32, i32) {
    %c0_i32 = arith.constant 0 : i32
    %c0_i32_0 = arith.constant 0 : i32
    %c0_i32_1 = arith.constant 0 : i32
    return %arg0, %c0_i32, %c0_i32_0 : i32, i32, i32
  }
  func.func @transform_3(%arg0: i32) -> (i32, i32, i32) {
    %c0_i32 = arith.constant 0 : i32
    %c0_i32_0 = arith.constant 0 : i32
    %c0_i32_1 = arith.constant 0 : i32
    return %arg0, %c0_i32, %c0_i32_0 : i32, i32, i32
  }
  func.func @transform_4(%arg0: i32) -> (i32, i32, i32) {
    %c0_i32 = arith.constant 0 : i32
    %c0_i32_0 = arith.constant 0 : i32
    %c0_i32_1 = arith.constant 0 : i32
    return %arg0, %c0_i32, %c0_i32_0 : i32, i32, i32
  }
}

</mosaic_0001>

<llo_original>
// kernel: tpu_custom_call.1
$region0: #{tpu_custom_call.1}
  #allocation0 [shape = 'u32[]', space=smem, size = 0x4, offset = 0x4, fixed_abs, tag = 'smem constant byte address 0x4 - core index']
  #allocation1 [shape = 'u32[144,128]{1,0:T(1,128)}', space=vmem, size = 0x12000, scoped, tag = 'internal scratch']
  %s0 = inlined_call_operand.vmem [shape: f32[4,1,16], index: 0, kind: input, shape index: {}]
  %s1 = inlined_call_operand.vmem [shape: f32[4,8,1], index: 1, kind: input, shape index: {}]
  %s2 = inlined_call_operand.vmem [shape: f32[4,8,1], index: 2, kind: input, shape index: {}]
  %s3 = inlined_call_operand.vmem [shape: f32[4,1,4], index: 3, kind: input, shape index: {}]
  %s4 = inlined_call_operand.hbm [shape: f32[4,8,16], index: 4, kind: output, shape index: {}]
  %s5 = sld [smem:[#allocation0]]
  $region49: #{tpu_custom_call.1} parent=0
    _
  %s7 = ssub.s32 1, %s5
  %s8 = scalar_select 0, %s7, %s5
  $region1: #{tpu_custom_call.1} parent=0
    #allocation2 [shape = 'u8[16384]{0}', space=vmem, size = 0x4000, scoped, tag = 'output window, operand 0']
    #allocation3 [shape = 's32[2]{0}', space=sflag, size = 0x8, scoped, tag = 'scoped memory for tpu_custom_call.1']
    %9 = vsyncpa [#allocation3], 0
    %s10 = scalar_lea.sflag [#allocation3], 1
    %11 = vsyncpa %s10, 0
    loop: start=0, step=1, limit=4
    $region2: #{tpu_custom_call.1} parent=1 // loop_pre_header
      _
    $region3: #{tpu_custom_call.1} parent=1 // loop_header
      %s13 = sphi 0, %s17
      %p14 = scmp.ge.s32.totalorder %s13, 4
      %s23 = sphi 0, %s25
      %s26 = sphi 0, %s23
      %s27 = sphi 0, %s26
      %s43 = sphi 0, %s27
      %s49 = sphi 0, %s51
      %s52 = sphi 0, %s49
      %s53 = sphi 0, %s52
      %s69 = sphi 0, %s53
      %s75 = sphi 0, %s77
      %s78 = sphi 0, %s75
      %s79 = sphi 0, %s78
      %s95 = sphi 0, %s79
      %s101 = sphi 0, %s103
      %s104 = sphi 0, %s101
      %s105 = sphi 0, %s104
      %s121 = sphi 0, %s105
      %s127 = sphi 0, %s129
      %s130 = sphi 0, %s127
      %s131 = sphi 0, %s130
      %s147 = sphi 0, %s131
    $region4: #{tpu_custom_call.1} parent=1 // loop_header_branch
      %16 = sbr.rel (%p14) target = $region8
    $region5: #{tpu_custom_call.1} parent=1 // loop_body
      %s18 = ssub.s32 %s13, 1
      %s19 = ssub.s32 %s13, 2
      %s20 = sadd.s32 %s13, 1
      %s21 = ssub.s32 %s13, %s20
      %p22 = scmp.eq.s32.totalorder %s21, 0
      %s24 = sadd.s32 %s23, 1
      %s25 = scalar_select %p22, %s23, %s24
      %p28 = pneg %p22
      %p29 = scmp.eq.s32.totalorder %s13, 1
      %p30 = por %p28, %p29
      %p31 = scmp.ne.s32.totalorder %s23, %s26
      %p32 = scmp.eq.s32.totalorder %s13, 0
      %p33 = por %p31, %p32
      %p34 = scmp.ne.s32.totalorder %s23, %s26
      %p35 = scmp.eq.s32.totalorder %s18, 1
      %p36 = por %p34, %p35
      %p37 = scmp.ne.s32.totalorder %s26, %s27
      %p38 = scmp.eq.s32.totalorder %s18, 0
      %p39 = por %p37, %p38
      %p40 = scmp.ne.s32.totalorder %s26, %s27
      %p41 = scmp.eq.s32.totalorder %s19, 1
      %p42 = por %p40, %p41
      %p44 = scmp.ne.s32.totalorder %s27, %s43
      %p45 = scmp.eq.s32.totalorder %s19, 0
      %p46 = por %p44, %p45
      %s47 = ssub.s32 %s13, %s20
      %p48 = scmp.eq.s32.totalorder %s47, 0
      %s50 = sadd.s32 %s49, 1
      %s51 = scalar_select %p48, %s49, %s50
      %p54 = pneg %p48
      %p55 = scmp.eq.s32.totalorder %s13, 1
      %p56 = por %p54, %p55
      %p57 = scmp.ne.s32.totalorder %s49, %s52
      %p58 = scmp.eq.s32.totalorder %s13, 0
      %p59 = por %p57, %p58
      %p60 = scmp.ne.s32.totalorder %s49, %s52
      %p61 = scmp.eq.s32.totalorder %s18, 1
      %p62 = por %p60, %p61
      %p63 = scmp.ne.s32.totalorder %s52, %s53
      %p64 = scmp.eq.s32.totalorder %s18, 0
      %p65 = por %p63, %p64
      %p66 = scmp.ne.s32.totalorder %s52, %s53
      %p67 = scmp.eq.s32.totalorder %s19, 1
      %p68 = por %p66, %p67
      %p70 = scmp.ne.s32.totalorder %s53, %s69
      %p71 = scmp.eq.s32.totalorder %s19, 0
      %p72 = por %p70, %p71
      %s73 = ssub.s32 %s13, %s20
      %p74 = scmp.eq.s32.totalorder %s73, 0
      %s76 = sadd.s32 %s75, 1
      %s77 = scalar_select %p74, %s75, %s76
      %p80 = pneg %p74
      %p81 = scmp.eq.s32.totalorder %s13, 1
      %p82 = por %p80, %p81
      %p83 = scmp.ne.s32.totalorder %s75, %s78
      %p84 = scmp.eq.s32.totalorder %s13, 0
      %p85 = por %p83, %p84
      %p86 = scmp.ne.s32.totalorder %s75, %s78
      %p87 = scmp.eq.s32.totalorder %s18, 1
      %p88 = por %p86, %p87
      %p89 = scmp.ne.s32.totalorder %s78, %s79
      %p90 = scmp.eq.s32.totalorder %s18, 0
      %p91 = por %p89, %p90
      %p92 = scmp.ne.s32.totalorder %s78, %s79
      %p93 = scmp.eq.s32.totalorder %s19, 1
      %p94 = por %p92, %p93
      %p96 = scmp.ne.s32.totalorder %s79, %s95
      %p97 = scmp.eq.s32.totalorder %s19, 0
      %p98 = por %p96, %p97
      %s99 = ssub.s32 %s13, %s20
      %p100 = scmp.eq.s32.totalorder %s99, 0
      %s102 = sadd.s32 %s101, 1
      %s103 = scalar_select %p100, %s101, %s102
      %p106 = pneg %p100
      %p107 = scmp.eq.s32.totalorder %s13, 1
      %p108 = por %p106, %p107
      %p109 = scmp.ne.s32.totalorder %s101, %s104
      %p110 = scmp.eq.s32.totalorder %s13, 0
      %p111 = por %p109, %p110
      %p112 = scmp.ne.s32.totalorder %s101, %s104
      %p113 = scmp.eq.s32.totalorder %s18, 1
      %p114 = por %p112, %p113
      %p115 = scmp.ne.s32.totalorder %s104, %s105
      %p116 = scmp.eq.s32.totalorder %s18, 0
      %p117 = por %p115, %p116
      %p118 = scmp.ne.s32.totalorder %s104, %s105
      %p119 = scmp.eq.s32.totalorder %s19, 1
      %p120 = por %p118, %p119
      %p122 = scmp.ne.s32.totalorder %s105, %s121
      %p123 = scmp.eq.s32.totalorder %s19, 0
      %p124 = por %p122, %p123
      %s125 = ssub.s32 %s13, %s20
      %p126 = scmp.eq.s32.totalorder %s125, 0
      %s128 = sadd.s32 %s127, 1
      %s129 = scalar_select %p126, %s127, %s128
      %p132 = pneg %p126
      %p133 = scmp.eq.s32.totalorder %s13, 1
      %p134 = por %p132, %p133
      %p135 = scmp.ne.s32.totalorder %s127, %s130
      %p136 = scmp.eq.s32.totalorder %s13, 0
      %p137 = por %p135, %p136
      %p138 = scmp.ne.s32.totalorder %s127, %s130
      %p139 = scmp.eq.s32.totalorder %s18, 1
      %p140 = por %p138, %p139
      %p141 = scmp.ne.s32.totalorder %s130, %s131
      %p142 = scmp.eq.s32.totalorder %s18, 0
      %p143 = por %p141, %p142
      %p144 = scmp.ne.s32.totalorder %s130, %s131
      %p145 = scmp.eq.s32.totalorder %s19, 1
      %p146 = por %p144, %p145
      %p148 = scmp.ne.s32.totalorder %s131, %s147
      %p149 = scmp.eq.s32.totalorder %s19, 0
      %p150 = por %p148, %p149
      %p151 = scmp.le.s32.totalorder 1, %s13
      %p152 = scmp.lt.s32.totalorder %s13, 3
      %p153 = pnand %p151, %p152
      %p154 = pneg %p153
      // Predicated region
      $region9: #{tpu_custom_call.1} parent=5 // pred_check
        _
      $region10: #{tpu_custom_call.1} parent=5 // pred_check_branch
        %156 = sbr.rel (%p153) target = $region12
      $region11: #{tpu_custom_call.1} parent=5 // pred_region
        %s157 = ssub.s32 %s13, 1
      $region12: #{tpu_custom_call.1} parent=5 // pred_fallthru
        _
      %p158 = scmp.lt.s32.totalorder %s13, 2
      // Predicated region
      $region13: #{tpu_custom_call.1} parent=5 // pred_check
        %p159 = pneg %p158
      $region14: #{tpu_custom_call.1} parent=5 // pred_check_branch
        %161 = sbr.rel (%p159) target = $region16
      $region15: #{tpu_custom_call.1} parent=5 // pred_region
        // Predicated region
        $region17: #{tpu_custom_call.1} parent=15 // pred_check
          %p162 = pneg %p33
        $region18: #{tpu_custom_call.1} parent=15 // pred_check_branch
          %164 = sbr.rel (%p162) target = $region20
        $region19: #{tpu_custom_call.1} parent=15 // pred_region
          %s165 = smul.u32 2, %s13
          %p166 = scmp.lt.s32.totalorder %s165, 3
          %s167 = scalar_select %p166, %s165, 3
          %s168 = scalar_lea.vmem %s0, %s167
          %s169 = smul.u32 2, %s13
        $region20: #{tpu_custom_call.1} parent=15 // pred_fallthru
          _
        // Predicated region
        $region21: #{tpu_custom_call.1} parent=15 // pred_check
          %p170 = pneg %p59
        $region22: #{tpu_custom_call.1} parent=15 // pred_check_branch
          %172 = sbr.rel (%p170) target = $region24
        $region23: #{tpu_custom_call.1} parent=15 // pred_region
          %s173 = smul.u32 2, %s13
          %p174 = scmp.lt.s32.totalorder %s173, 3
          %s175 = scalar_select %p174, %s173, 3
          %s176 = smul.addr %s175, 8
          %s177 = scalar_lea.vmem %s1, %s176
          %s178 = smul.u32 2, %s13
        $region24: #{tpu_custom_call.1} parent=15 // pred_fallthru
          _
        // Predicated region
        $region25: #{tpu_custom_call.1} parent=15 // pred_check
          %p179 = pneg %p85
        $region26: #{tpu_custom_call.1} parent=15 // pred_check_branch
          %181 = sbr.rel (%p179) target = $region28
        $region27: #{tpu_custom_call.1} parent=15 // pred_region
          %s182 = smul.u32 2, %s13
          %p183 = scmp.lt.s32.totalorder %s182, 3
          %s184 = scalar_select %p183, %s182, 3
          %s185 = smul.addr %s184, 8
          %s186 = scalar_lea.vmem %s2, %s185
          %s187 = smul.u32 2, %s13
        $region28: #{tpu_custom_call.1} parent=15 // pred_fallthru
          _
        // Predicated region
        $region29: #{tpu_custom_call.1} parent=15 // pred_check
          %p188 = pneg %p111
        $region30: #{tpu_custom_call.1} parent=15 // pred_check_branch
          %190 = sbr.rel (%p188) target = $region32
        $region31: #{tpu_custom_call.1} parent=15 // pred_region
          %s191 = smul.u32 2, %s13
          %p192 = scmp.lt.s32.totalorder %s191, 3
          %s193 = scalar_select %p192, %s191, 3
          %s194 = scalar_lea.vmem %s3, %s193
          %s195 = smul.u32 2, %s13
        $region32: #{tpu_custom_call.1} parent=15 // pred_fallthru
          _
      $region16: #{tpu_custom_call.1} parent=5 // pred_fallthru
        _
      %p196 = scmp.le.s32.totalorder 1, %s13
      %p197 = scmp.lt.s32.totalorder %s13, 3
      %p198 = pnand %p196, %p197
      %p199 = pneg %p198
      // Predicated region
      $region33: #{tpu_custom_call.1} parent=5 // pred_check
        _
      $region34: #{tpu_custom_call.1} parent=5 // pred_check_branch
        %201 = sbr.rel (%p198) target = $region36
      $region35: #{tpu_custom_call.1} parent=5 // pred_region
        %s202 = ssub.s32 %s13, 1
        %s203 = smul.u32 2, %s18
        %p204 = scmp.lt.s32.totalorder %s203, 3
        %s205 = scalar_select %p204, %s203, 3
        %s206 = scalar_lea.vmem %s0, %s205
        %p207 = pneg %p39
        %p208 = pneg %p36
        %s209 = smul.u32 2, %s18
        %p210 = scmp.lt.s32.totalorder %s209, 3
        %s211 = scalar_select %p210, %s209, 3
        %s212 = smul.addr %s211, 8
        %s213 = scalar_lea.vmem %s1, %s212
        %p214 = pneg %p65
        %p215 = pneg %p62
        %s216 = smul.u32 2, %s18
        %p217 = scmp.lt.s32.totalorder %s216, 3
        %s218 = scalar_select %p217, %s216, 3
        %s219 = smul.addr %s218, 8
        %s220 = scalar_lea.vmem %s2, %s219
        %p221 = pneg %p91
        %p222 = pneg %p88
        %s223 = smul.u32 2, %s18
        %p224 = scmp.lt.s32.totalorder %s223, 3
        %s225 = scalar_select %p224, %s223, 3
        %s226 = scalar_lea.vmem %s3, %s225
        %p227 = pneg %p117
        %p228 = pneg %p114
        %p229 = pneg %p143
        %p230 = pneg %p140
        %s231 = sand.u32 %s130, 1
        %s232 = scalar_lea.sflag [#allocation3], %s231
        %s233 = sand.u32 %s130, 1
        %s234 = smul.addr %s233, 16
        %s235 = scalar_lea.vmem [#allocation2], %s234
        %s236 = smul.u32 2, %s18
        %p237 = scmp.lt.s32.totalorder %s236, 3
        %s238 = scalar_select %p237, %s236, 3
        %s239 = scalar_lea.vmem %s0, %s238
        %s240 = smul.u32 2, %s18
        %s241 = smul.u32 2, %s18
        %p242 = scmp.lt.s32.totalorder %s241, 3
        %s243 = scalar_select %p242, %s241, 3
        %s244 = smul.addr %s243, 8
        %s245 = scalar_lea.vmem %s1, %s244
        %s246 = smul.u32 2, %s18
        %s247 = smul.u32 2, %s18
        %p248 = scmp.lt.s32.totalorder %s247, 3
        %s249 = scalar_select %p248, %s247, 3
        %s250 = smul.addr %s249, 8
        %s251 = scalar_lea.vmem %s2, %s250
        %s252 = smul.u32 2, %s18
        %s253 = smul.u32 2, %s18
        %p254 = scmp.lt.s32.totalorder %s253, 3
        %s255 = scalar_select %p254, %s253, 3
        %s256 = scalar_lea.vmem %s3, %s255
        %s257 = smul.u32 2, %s18
        %s258 = smul.u32 2, %s18
        %v259 = vld [vmem:[%s239] sm:$0x1]
        %v260 = vld [vmem:[%s239 + $0x1] sm:$0x1]
        %v261 = vld [vmem:[%s245] sm:$0xff]
        %v262 = vld [vmem:[%s245 + $0x8] sm:$0xff]
        %v263 = vld [vmem:[%s251] sm:$0xff]
        %v264 = vld [vmem:[%s251 + $0x8] sm:$0xff]
        %v265 = vld [vmem:[%s256] sm:$0x1]
        %v266 = vld [vmem:[%s256 + $0x1] sm:$0x1]
        %v267 = vmax.f32 %v265, 0.0
        %v268 = vmax.f32 %v266, 0.0
        %v271 = vlaneseq
        %v272 = vshrl.u32 %v271, 7
        %v273 = vsub.s32 0, %v272
        %v274 = vrot.slane %v259, %v273
        %v275 = vlaneseq
        %v276 = vshrl.u32 %v275, 7
        %v277 = vsub.s32 0, %v276
        %v278 = vrot.slane %v260, %v277
        %282 = vset.pattern.permute.xlu0 0
        %283 = vperm.xlu0 %282, %v261
        %v284 = vpop.permute.xlu0 %283
        %287 = vset.pattern.permute.xlu0 0
        %288 = vperm.xlu0 %287, %v262
        %v289 = vpop.permute.xlu0 %288
        %v291 = vsub.f32 %v274, %v284
        %v292 = vsub.f32 %v278, %v289
        %v293 = vsub.f32 0.0, %v291
        %v294 = vsub.f32 0.0, %v292
        %v297 = vlaneseq
        %v298 = vshrl.u32 %v297, 7
        %v299 = vsub.s32 0, %v298
        %v300 = vrot.slane %v267, %v299
        %v301 = vlaneseq
        %v302 = vshrl.u32 %v301, 7
        %v303 = vsub.s32 0, %v302
        %v304 = vrot.slane %v268, %v303
        %305 = vset.pattern.permute.xlu0 2
        %306 = vperm.xlu0 %305, %v300
        %v307 = vpop.permute.xlu0 %306
        %309 = vset.pattern.permute.xlu0 2
        %310 = vperm.xlu0 %309, %v304
        %v311 = vpop.permute.xlu0 %310
        %v313 = vmul.f32 %v293, %v307
        %v314 = vmul.f32 %v294, %v311
        %315 = vset.pattern.permute.xlu0 1
        %316 = vperm.xlu0 %315, %v300
        %v317 = vpop.permute.xlu0 %316
        %319 = vset.pattern.permute.xlu0 1
        %320 = vperm.xlu0 %319, %v304
        %v321 = vpop.permute.xlu0 %320
        %v323 = vmul.f32 %v293, %v317
        %v324 = vmul.f32 %v294, %v321
        %v325 = vmax.f32 %v323, 0.0
        %v326 = vmax.f32 %v324, 0.0
        %v327 = vand.u32 2147483647, %v323
        %v328 = vand.u32 2147483647, %v324
        %v329 = vsub.f32 0.0, %v327
        %v330 = vsub.f32 0.0, %v328
        %v331 = vmul.f32 %v329, 1.442695
        %v332 = vpow.pop %v331
        %v333 = vmul.f32 %v330, 1.442695
        %v334 = vpow.pop %v333
        %v335 = vadd.f32 %v332, 1.0
        %v336 = vadd.f32 %v334, 1.0
        %v337 = vsub.f32 %v313, %v325
        %v338 = vsub.f32 %v314, %v326
        %v339 = vmul.f32 %v337, 1.442695
        %v340 = vpow.pop %v339
        %v341 = vmul.f32 %v338, 1.442695
        %v342 = vpow.pop %v341
        %v343 = vrcp.pop %v335
        %v344 = vmul.f32 %v340, %v343
        %v345 = vrcp.pop %v336
        %v346 = vmul.f32 %v342, %v345
        %348 = vset.pattern.permute.xlu0 0
        %349 = vperm.xlu0 %348, %v263
        %v350 = vpop.permute.xlu0 %349
        %353 = vset.pattern.permute.xlu0 0
        %354 = vperm.xlu0 %353, %v264
        %v355 = vpop.permute.xlu0 %354
        %v357 = vmul.f32 %v350, %v344
        %v358 = vmul.f32 %v355, %v346
        %v361 = vlaneseq
        %v362 = vshrl.u32 %v361, 7
        %v363 = vsub.s32 0, %v362
        %v364 = vrot.slane %v265, %v363
        %v365 = vlaneseq
        %v366 = vshrl.u32 %v365, 7
        %v367 = vsub.s32 0, %v366
        %v368 = vrot.slane %v266, %v367
        %369 = vset.pattern.permute.xlu0 0
        %370 = vperm.xlu0 %369, %v364
        %v371 = vpop.permute.xlu0 %370
        %373 = vset.pattern.permute.xlu0 0
        %374 = vperm.xlu0 %373, %v368
        %v375 = vpop.permute.xlu0 %374
        %v377 = vadd.f32 %v357, %v371
        %v378 = vadd.f32 %v358, %v375
        %vm379 = vcmask 130048
        %380 = vst.msk [vmem:[%s235] sm:$0xff] %vm379, %v377
        %381 = vst.msk [vmem:[%s235 + $0x8] sm:$0xff] %vm379, %v378
        %s382 = sand.u32 %s130, 1
        %s383 = scalar_lea.sflag [#allocation3], %s382
        %s384 = sand.u32 %s130, 1
        %s385 = smul.addr %s384, 16
        %s386 = scalar_lea.vmem [#allocation2], %s385
        // Predicated region
        $region37: #{tpu_custom_call.1} parent=35 // pred_check
          %p387 = pneg %p140
        $region38: #{tpu_custom_call.1} parent=35 // pred_check_branch
          %389 = sbr.rel (%p387) target = $region40
        $region39: #{tpu_custom_call.1} parent=35 // pred_region
          %s390 = smul.u32 2, %s18
          %s392 = ssub.s32 256, 256
          %393 = vsyncadd %s383, %s392
          %s394 = smul.addr %s390, 128
          %s395 = scalar_lea.hbm %s4, %s394
          %s396 = sshll.u32 %s386, 4
          %s397 = int_to_ptr.vmem [resolvable:$true] %s396
          %402 = dma.vmem_to_hbm [thread:$0]  %s397, 256, %s395, %s383, 128, 128, 8
        $region40: #{tpu_custom_call.1} parent=35 // pred_fallthru
          _
      $region36: #{tpu_custom_call.1} parent=5 // pred_fallthru
        _
      %p403 = scmp.le.s32.totalorder 2, %s13
      // Predicated region
      $region41: #{tpu_custom_call.1} parent=5 // pred_check
        %p404 = pneg %p403
      $region42: #{tpu_custom_call.1} parent=5 // pred_check_branch
        %406 = sbr.rel (%p404) target = $region44
      $region43: #{tpu_custom_call.1} parent=5 // pred_region
        %s407 = ssub.s32 %s13, 2
        // Predicated region
        $region45: #{tpu_custom_call.1} parent=43 // pred_check
          %p408 = pneg %p146
        $region46: #{tpu_custom_call.1} parent=43 // pred_check_branch
          %410 = sbr.rel (%p408) target = $region48
        $region47: #{tpu_custom_call.1} parent=43 // pred_region
          %s411 = sand.u32 %s131, 1
          %s412 = scalar_lea.sflag [#allocation3], %s411
          %s413 = sand.u32 %s131, 1
          %s414 = smul.addr %s413, 16
          %s415 = scalar_lea.vmem [#allocation2], %s414
          %416 = dma.done %s412, 256
        $region48: #{tpu_custom_call.1} parent=43 // pred_fallthru
          _
      $region44: #{tpu_custom_call.1} parent=5 // pred_fallthru
        _
    $region6: #{tpu_custom_call.1} parent=1 // loop_footer
      %s17 = sadd.s32 1, %s13
    $region7: #{tpu_custom_call.1} parent=1 // loop_footer_branch
      %12 = sbr.rel target = $region3
    $region8: #{tpu_custom_call.1} parent=1 // loop_exit
      _
    %417 = vsyncpa [#allocation3], 1
    %s418 = scalar_lea.sflag [#allocation3], 1
    %419 = vsyncpa %s418, 1

</llo_original>
